<compile_context>
chip_gen: v5e
topology: v5e:2x2
jax: 0.10.0
libtpu: 0.0.40
codegen_flags: <defaults>
</compile_context>

<pallas_src>
import functools

import jax
import jax.numpy as jnp
from jax import lax
from jax.experimental import pallas as pl
from jax.experimental.pallas import tpu as pltpu


_DEFAULT_BLOCK_BYTES = 2 * 1024 * 1024  # target bytes of one x block in VMEM


def make_rope_tables(dim: int, max_seq_len: int = 512):
    """cos/sin buffers matching the PyTorch __init__ (shape [max_seq_len, dim//2])."""
    inv_freq = 1.0 / (10000.0 ** (jnp.arange(0, dim, 2, dtype=jnp.float32) / dim))
    t = jnp.arange(max_seq_len, dtype=jnp.float32)
    freqs = jnp.einsum("i,j->ij", t, inv_freq)
    return jnp.cos(freqs), jnp.sin(freqs)


# ----------------------------------------------------------------------- kernels


def _rope_fused_kernel(cos_ref, sin_ref, x_ref, o_ref, *, half):
    """Fused even/odd de-interleave + rotation.

    cos_ref : (R, D) f32, cos_ref[r, j] =  cos[r % S, j % (D/2)]
    sin_ref : (R, D) f32, sin_ref[r, j] = -sin[...] for j < D/2, +sin[...] otherwise
    x_ref   : (R, D) interleaved rows [a0, b0, a1, b1, ...]
    o_ref   : (R, D) = [a*cos - b*sin | a*sin + b*cos]
    """
    x = x_ref[...].astype(jnp.float32)
    rows, dim = x.shape
    # Source lane for the de-interleaved ("concat") layout:
    #   j <  D/2 -> 2*j           (even input lanes -> first half)
    #   j >= D/2 -> 2*j + 1 - D   (odd  input lanes -> second half)
    j = lax.broadcasted_iota(jnp.int32, (rows, dim), 1)
    src = jnp.where(j < half, 2 * j, 2 * j + 1 - dim)
    xd = jnp.take_along_axis(x, src, axis=-1, mode="promise_in_bounds")  # [x1 | x2]
    xs = jnp.concatenate([xd[:, half:], xd[:, :half]], axis=-1)          # [x2 | x1]
    o_ref[...] = (xd * cos_ref[...] + xs * sin_ref[...]).astype(o_ref.dtype)


def _rope_preshuffled_kernel(cos_ref, sin_ref, xd_ref, o_ref, *, half):
    """Fallback: even/odd de-interleave already done in the wrapper."""
    xd = xd_ref[...].astype(jnp.float32)
    xs = jnp.concatenate([xd[:, half:], xd[:, :half]], axis=-1)
    o_ref[...] = (xd * cos_ref[...] + xs * sin_ref[...]).astype(o_ref.dtype)


# ----------------------------------------------------------------------- wrapper


def _choose_rows_per_block(bh, seq, dim, itemsize, block_bytes):
    """Largest t | (B*H) whose (t*S, D) block is sublane-aligned and fits the budget."""
    divisors = [c for c in range(1, bh + 1) if bh % c == 0]
    aligned = [c for c in divisors if (c * seq) % 8 == 0]
    if not aligned:
        return bh * seq  # single full-extent block (always layout-legal)
    fitting = [c for c in aligned if c * seq * dim * itemsize <= block_bytes]
    t = max(fitting) if fitting else min(aligned)
    return t * seq


def _rope_pallas(x, cos_table, sin_table, *, block_bytes, fuse_deinterleave):
    B, H, S, D = x.shape
    assert D % 2 == 0, "head dim must be even for rotary embedding"
    assert 2 * cos_table.shape[1] == D, "rope table dim does not match x's last dim"
    assert S <= cos_table.shape[0], "seq_len exceeds max_seq_len of the rope tables"
    half = D // 2
    rows = B * H * S

    R = _choose_rows_per_block(B * H, S, D, jnp.dtype(x.dtype).itemsize, block_bytes)
    n_blocks = rows // R

    # Full-width, sign-folded tables tiled to exactly one block of rows.  Constant
    # index_map below -> DMA'd into VMEM once, resident across all grid steps.
    cos = cos_table[:S]
    sin = sin_table[:S]
    cos_f = jnp.tile(jnp.concatenate([cos, cos], axis=-1), (R // S, 1))
    sin_f = jnp.tile(jnp.concatenate([-sin, sin], axis=-1), (R // S, 1))

    xf = x.reshape(rows, D)  # free: contiguous, metadata-only reshape
    if fuse_deinterleave:
        kernel = functools.partial(_rope_fused_kernel, half=half)
        x_in = xf
    else:
        # TODO(synk): wrapper-side de-interleave costs one extra HBM pass over x; it is
        # only used if the in-kernel lane gather is unsupported on this JAX/TPU build.
        kernel = functools.partial(_rope_preshuffled_kernel, half=half)
        x_in = jnp.concatenate([xf[:, 0::2], xf[:, 1::2]], axis=-1)

    out = pl.pallas_call(
        kernel,
        out_shape=jax.ShapeDtypeStruct((rows, D), x.dtype),
        grid_spec=pltpu.PrefetchScalarGridSpec(
            num_scalar_prefetch=0,
            grid=(n_blocks,),
            in_specs=[
                pl.BlockSpec((R, D), lambda i: (0, 0)),  # cos table (resident)
                pl.BlockSpec((R, D), lambda i: (0, 0)),  # sin table (resident)
                pl.BlockSpec((R, D), lambda i: (i, 0)),  # x rows
            ],
            out_specs=pl.BlockSpec((R, D), lambda i: (i, 0)),
        ),
        compiler_params=pltpu.CompilerParams(
            dimension_semantics=("parallel",),          # lets v7x shard across its 2 TCs
            vmem_limit_bytes=32 * 1024 * 1024,
        ),
    )(cos_f, sin_f, x_in)
    return out.reshape(B, H, S, D)


def rotary_positional_embedding(x, cos_table, sin_table, *,
                                block_bytes=_DEFAULT_BLOCK_BYTES):
    """x: [B, H, S, D] -> rotated [B, H, S, D] (concat-style RoPE, matches nn.Module)."""
    try:
        return jax.block_until_ready(
            _rope_pallas(x, cos_table, sin_table,
                         block_bytes=block_bytes, fuse_deinterleave=True))
    except Exception:
        return jax.block_until_ready(
            _rope_pallas(x, cos_table, sin_table,
                         block_bytes=block_bytes, fuse_deinterleave=False))


# --------------------------------------------------------------------- reference


def _reference(x, cos_table, sin_table):
    S = x.shape[2]
    cos = cos_table[:S][None, None]
    sin = sin_table[:S][None, None]
    x1 = x[..., ::2]
    x2 = x[..., 1::2]
    return jnp.concatenate([x1 * cos - x2 * sin, x1 * sin + x2 * cos], axis=-1)


if __name__ == "__main__":
    B, H, S, D = 2, 4, 8, 32
    max_seq_len = 512

    key = jax.random.PRNGKey(0)
    x = jax.random.normal(key, (B, H, S, D), dtype=jnp.float32)
    cos_table, sin_table = make_rope_tables(D, max_seq_len)
    ref = _reference(x, cos_table, sin_table)

    # Default: one fat block covering all rows.
    out = rotary_positional_embedding(x, cos_table, sin_table)
    out = jax.block_until_ready(out)
    assert out.shape == (B, H, S, D)
    assert jnp.allclose(out, ref, atol=1e-5, rtol=1e-5)

    # Tiny VMEM budget -> multiple grid steps, exercises the pipelined path too.
    out_small = rotary_positional_embedding(x, cos_table, sin_table, block_bytes=4096)
    out_small = jax.block_until_ready(out_small)
    assert jnp.allclose(out_small, ref, atol=1e-5, rtol=1e-5)

    print("KERNEL_OK")
</pallas_src>

<mosaic_0001>
module attributes {stable_mosaic.version = 11 : i64} {
  func.func @_rope_fused_kernel(%arg0: i32, %arg1: memref<64x32xf32, #tpu.memory_space<vmem>>, %arg2: memref<64x32xf32, #tpu.memory_space<vmem>>, %arg3: memref<64x32xf32, #tpu.memory_space<vmem>>, %arg4: memref<64x32xf32, #tpu.memory_space<vmem>>) attributes {dimension_semantics = [#tpu.dimension_semantics<parallel>], iteration_bounds = array<i64: 1>, scalar_prefetch = 0 : i64, scratch_operands = 0 : i64, tpu.core_type = #tpu.core_type<tc>, window_params = [{pipeline_mode = #tpu.pipeline_mode<synchronous>, transform_indices = @transform_0, window_bounds = array<i64: 64, 32>}, {pipeline_mode = #tpu.pipeline_mode<synchronous>, transform_indices = @transform_1, window_bounds = array<i64: 64, 32>}, {transform_indices = @transform_2, window_bounds = array<i64: 64, 32>}, {transform_indices = @transform_3, window_bounds = array<i64: 64, 32>}]} {
    %c0 = arith.constant 0 : index
    %c0_0 = arith.constant 0 : index
    %0 = vector.load %arg3[%c0, %c0_0] : memref<64x32xf32, #tpu.memory_space<vmem>>, vector<64x32xf32>
    %1 = tpu.iota {dimensions = array<i32: 1>} : vector<64x32xi32>
    %c16_i32 = arith.constant 16 : i32
    %2 = vector.broadcast %c16_i32 : i32 to vector<64x32xi32>
    %3 = arith.cmpi slt, %1, %2 : vector<64x32xi32>
    %c2_i32 = arith.constant 2 : i32
    %4 = vector.broadcast %c2_i32 : i32 to vector<64x32xi32>
    %5 = arith.muli %4, %1 : vector<64x32xi32>
    %c2_i32_1 = arith.constant 2 : i32
    %6 = vector.broadcast %c2_i32_1 : i32 to vector<64x32xi32>
    %7 = arith.muli %6, %1 : vector<64x32xi32>
    %c1_i32 = arith.constant 1 : i32
    %8 = vector.broadcast %c1_i32 : i32 to vector<64x32xi32>
    %9 = arith.addi %7, %8 : vector<64x32xi32>
    %c32_i32 = arith.constant 32 : i32
    %10 = vector.broadcast %c32_i32 : i32 to vector<64x32xi32>
    %11 = arith.subi %9, %10 : vector<64x32xi32>
    %12 = arith.select %3, %5, %11 : vector<64x32xi1>, vector<64x32xi32>
    %13 = vector.shape_cast %12 : vector<64x32xi32> to vector<64x32x1xi32>
    %14 = vector.shape_cast %13 : vector<64x32x1xi32> to vector<64x32xi32>
    %15 = tpu.dynamic_gather %0[%14] in [1] : vector<64x32xf32>, vector<64x32xi32> -> vector<64x32xf32>
    %16 = vector.extract_strided_slice %15 {offsets = [0, 16], sizes = [64, 16], strides = [1, 1]} : vector<64x32xf32> to vector<64x16xf32>
    %17 = vector.extract_strided_slice %15 {offsets = [0, 0], sizes = [64, 16], strides = [1, 1]} : vector<64x32xf32> to vector<64x16xf32>
    %18 = tpu.concatenate %16, %17 in 1 : vector<64x16xf32>, vector<64x16xf32> -> vector<64x32xf32>
    %c0_2 = arith.constant 0 : index
    %c0_3 = arith.constant 0 : index
    %19 = vector.load %arg1[%c0_2, %c0_3] : memref<64x32xf32, #tpu.memory_space<vmem>>, vector<64x32xf32>
    %20 = arith.mulf %15, %19 : vector<64x32xf32>
    %c0_4 = arith.constant 0 : index
    %c0_5 = arith.constant 0 : index
    %21 = vector.load %arg2[%c0_4, %c0_5] : memref<64x32xf32, #tpu.memory_space<vmem>>, vector<64x32xf32>
    %22 = arith.mulf %18, %21 : vector<64x32xf32>
    %23 = arith.addf %20, %22 : vector<64x32xf32>
    %c0_6 = arith.constant 0 : index
    %c0_7 = arith.constant 0 : index
    %24 = vector.load %arg4[%c0_6, %c0_7] : memref<64x32xf32, #tpu.memory_space<vmem>>, vector<64x32xf32>
    tpu.vector_store %arg4[%c0_6, %c0_7], %23 {strides = array<i32>} : memref<64x32xf32, #tpu.memory_space<vmem>>, vector<64x32xf32>,
    return
  }
  func.func @transform_0(%arg0: i32) -> (i32, i32) {
    %c0_i32 = arith.constant 0 : i32
    %c0_i32_0 = arith.constant 0 : i32
    %c0_i32_1 = arith.constant 0 : i32
    return %c0_i32, %c0_i32_0 : i32, i32
  }
  func.func @transform_1(%arg0: i32) -> (i32, i32) {
    %c0_i32 = arith.constant 0 : i32
    %c0_i32_0 = arith.constant 0 : i32
    %c0_i32_1 = arith.constant 0 : i32
    return %c0_i32, %c0_i32_0 : i32, i32
  }
  func.func @transform_2(%arg0: i32) -> (i32, i32) {
    %c0_i32 = arith.constant 0 : i32
    %c0_i32_0 = arith.constant 0 : i32
    return %arg0, %c0_i32 : i32, i32
  }
  func.func @transform_3(%arg0: i32) -> (i32, i32) {
    %c0_i32 = arith.constant 0 : i32
    %c0_i32_0 = arith.constant 0 : i32
    return %arg0, %c0_i32 : i32, i32
  }
}

module attributes {stable_mosaic.version = 11 : i64} {
  func.func @_rope_preshuffled_kernel(%arg0: i32, %arg1: memref<64x32xf32, #tpu.memory_space<vmem>>, %arg2: memref<64x32xf32, #tpu.memory_space<vmem>>, %arg3: memref<64x32xf32, #tpu.memory_space<vmem>>, %arg4: memref<64x32xf32, #tpu.memory_space<vmem>>) attributes {dimension_semantics = [#tpu.dimension_semantics<parallel>], iteration_bounds = array<i64: 1>, scalar_prefetch = 0 : i64, scratch_operands = 0 : i64, tpu.core_type = #tpu.core_type<tc>, window_params = [{pipeline_mode = #tpu.pipeline_mode<synchronous>, transform_indices = @transform_0, window_bounds = array<i64: 64, 32>}, {pipeline_mode = #tpu.pipeline_mode<synchronous>, transform_indices = @transform_1, window_bounds = array<i64: 64, 32>}, {transform_indices = @transform_2, window_bounds = array<i64: 64, 32>}, {transform_indices = @transform_3, window_bounds = array<i64: 64, 32>}]} {
    %c0 = arith.constant 0 : index
    %c0_0 = arith.constant 0 : index
    %0 = vector.load %arg3[%c0, %c0_0] : memref<64x32xf32, #tpu.memory_space<vmem>>, vector<64x32xf32>
    %1 = vector.extract_strided_slice %0 {offsets = [0, 16], sizes = [64, 16], strides = [1, 1]} : vector<64x32xf32> to vector<64x16xf32>
    %2 = vector.extract_strided_slice %0 {offsets = [0, 0], sizes = [64, 16], strides = [1, 1]} : vector<64x32xf32> to vector<64x16xf32>
    %3 = tpu.concatenate %1, %2 in 1 : vector<64x16xf32>, vector<64x16xf32> -> vector<64x32xf32>
    %c0_1 = arith.constant 0 : index
    %c0_2 = arith.constant 0 : index
    %4 = vector.load %arg1[%c0_1, %c0_2] : memref<64x32xf32, #tpu.memory_space<vmem>>, vector<64x32xf32>
    %5 = arith.mulf %0, %4 : vector<64x32xf32>
    %c0_3 = arith.constant 0 : index
    %c0_4 = arith.constant 0 : index
    %6 = vector.load %arg2[%c0_3, %c0_4] : memref<64x32xf32, #tpu.memory_space<vmem>>, vector<64x32xf32>
    %7 = arith.mulf %3, %6 : vector<64x32xf32>
    %8 = arith.addf %5, %7 : vector<64x32xf32>
    %c0_5 = arith.constant 0 : index
    %c0_6 = arith.constant 0 : index
    %9 = vector.load %arg4[%c0_5, %c0_6] : memref<64x32xf32, #tpu.memory_space<vmem>>, vector<64x32xf32>
    tpu.vector_store %arg4[%c0_5, %c0_6], %8 {strides = array<i32>} : memref<64x32xf32, #tpu.memory_space<vmem>>, vector<64x32xf32>,
    return
  }
  func.func @transform_0(%arg0: i32) -> (i32, i32) {
    %c0_i32 = arith.constant 0 : i32
    %c0_i32_0 = arith.constant 0 : i32
    %c0_i32_1 = arith.constant 0 : i32
    return %c0_i32, %c0_i32_0 : i32, i32
  }
  func.func @transform_1(%arg0: i32) -> (i32, i32) {
    %c0_i32 = arith.constant 0 : i32
    %c0_i32_0 = arith.constant 0 : i32
    %c0_i32_1 = arith.constant 0 : i32
    return %c0_i32, %c0_i32_0 : i32, i32
  }
  func.func @transform_2(%arg0: i32) -> (i32, i32) {
    %c0_i32 = arith.constant 0 : i32
    %c0_i32_0 = arith.constant 0 : i32
    return %arg0, %c0_i32 : i32, i32
  }
  func.func @transform_3(%arg0: i32) -> (i32, i32) {
    %c0_i32 = arith.constant 0 : i32
    %c0_i32_0 = arith.constant 0 : i32
    return %arg0, %c0_i32 : i32, i32
  }
}

</mosaic_0001>

<llo_original>
// kernel: tpu_custom_call.1
$region0: #{tpu_custom_call.1}
  #allocation0 [shape = 'u32[]', space=smem, size = 0x4, offset = 0x4, fixed_abs, tag = 'smem constant byte address 0x4 - core index']
  #allocation1 [shape = 'u32[72,128]{1,0:T(1,128)}', space=vmem, size = 0x9000, scoped, tag = 'internal scratch']
  %s0 = inlined_call_operand.vmem [shape: f32[64,32], index: 0, kind: input, shape index: {}]
  %s1 = inlined_call_operand.vmem [shape: f32[64,32], index: 1, kind: input, shape index: {}]
  %s2 = inlined_call_operand.vmem [shape: f32[64,32], index: 2, kind: input, shape index: {}]
  %s3 = inlined_call_operand.vmem [shape: f32[64,32], index: 3, kind: output, shape index: {}]
  %s4 = sld [smem:[#allocation0]]
  $region22: #{tpu_custom_call.1} parent=0
    _
  %s6 = ssub.s32 1, %s4
  %s7 = scalar_select 0, %s6, %s4
  // Predicated region
  $region2: #{tpu_custom_call.1} parent=0 // pred_check
    _
  $region3: #{tpu_custom_call.1} parent=0 // pred_check_branch
    %9 = sbr.rel (0) target = $region5
  $region4: #{tpu_custom_call.1} parent=0 // pred_region
    _
  $region5: #{tpu_custom_call.1} parent=0 // pred_fallthru
    _
  // Predicated region
  $region6: #{tpu_custom_call.1} parent=0 // pred_check
    _
  $region7: #{tpu_custom_call.1} parent=0 // pred_check_branch
    %11 = sbr.rel (0) target = $region9
  $region8: #{tpu_custom_call.1} parent=0 // pred_region
    _
  $region9: #{tpu_custom_call.1} parent=0 // pred_fallthru
    _
  // Predicated region
  $region10: #{tpu_custom_call.1} parent=0 // pred_check
    _
  $region11: #{tpu_custom_call.1} parent=0 // pred_check_branch
    %13 = sbr.rel (0) target = $region13
  $region12: #{tpu_custom_call.1} parent=0 // pred_region
    _
  $region13: #{tpu_custom_call.1} parent=0 // pred_fallthru
    _
  %v14 = vld [vmem:[%s2] sm:$0xff]
  %v15 = vld [vmem:[%s2 + $0x8] sm:$0xff]
  %v16 = vld [vmem:[%s2 + $0x10] sm:$0xff]
  %v17 = vld [vmem:[%s2 + $0x18] sm:$0xff]
  %v18 = vld [vmem:[%s2 + $0x20] sm:$0xff]
  %v19 = vld [vmem:[%s2 + $0x28] sm:$0xff]
  %v20 = vld [vmem:[%s2 + $0x30] sm:$0xff]
  %v21 = vld [vmem:[%s2 + $0x38] sm:$0xff]
  %v22 = vlaneseq
  %v23 = vand.u32 %v22, 127
  %vm24 = vcmp.lt.s32.totalorder %v23, 16
  %v25 = vmul.u32 %v23, 2
  %v26 = vadd.s32 %v25, 1
  %v27 = vsub.s32 %v26, 32
  %v28 = vsel %vm24, %v25, %v27
  %29 = vset.pattern.permute.xlu0 %v28
  %30 = vperm.xlu0 %29, %v14
  %v31 = vpop.permute.xlu0 %30
  %32 = vset.pattern.permute.xlu0 %v28
  %33 = vperm.xlu0 %32, %v15
  %v34 = vpop.permute.xlu0 %33
  %35 = vset.pattern.permute.xlu0 %v28
  %36 = vperm.xlu0 %35, %v16
  %v37 = vpop.permute.xlu0 %36
  %38 = vset.pattern.permute.xlu0 %v28
  %39 = vperm.xlu0 %38, %v17
  %v40 = vpop.permute.xlu0 %39
  %41 = vset.pattern.permute.xlu0 %v28
  %42 = vperm.xlu0 %41, %v18
  %v43 = vpop.permute.xlu0 %42
  %44 = vset.pattern.permute.xlu0 %v28
  %45 = vperm.xlu0 %44, %v19
  %v46 = vpop.permute.xlu0 %45
  %47 = vset.pattern.permute.xlu0 %v28
  %48 = vperm.xlu0 %47, %v20
  %v49 = vpop.permute.xlu0 %48
  %50 = vset.pattern.permute.xlu0 %v28
  %51 = vperm.xlu0 %50, %v21
  %v52 = vpop.permute.xlu0 %51
  %61 = vrot.lane.b32.xlu0 %v31, 112
  %v62 = vpop.permute.xlu0 %61
  %63 = vrot.lane.b32.xlu0 %v34, 112
  %v64 = vpop.permute.xlu0 %63
  %65 = vrot.lane.b32.xlu0 %v37, 112
  %v66 = vpop.permute.xlu0 %65
  %67 = vrot.lane.b32.xlu0 %v40, 112
  %v68 = vpop.permute.xlu0 %67
  %69 = vrot.lane.b32.xlu0 %v43, 112
  %v70 = vpop.permute.xlu0 %69
  %71 = vrot.lane.b32.xlu0 %v46, 112
  %v72 = vpop.permute.xlu0 %71
  %73 = vrot.lane.b32.xlu0 %v49, 112
  %v74 = vpop.permute.xlu0 %73
  %75 = vrot.lane.b32.xlu0 %v52, 112
  %v76 = vpop.permute.xlu0 %75
  %85 = vrot.lane.b32.xlu0 %v31, 16
  %v86 = vpop.permute.xlu0 %85
  %87 = vrot.lane.b32.xlu0 %v34, 16
  %v88 = vpop.permute.xlu0 %87
  %89 = vrot.lane.b32.xlu0 %v37, 16
  %v90 = vpop.permute.xlu0 %89
  %91 = vrot.lane.b32.xlu0 %v40, 16
  %v92 = vpop.permute.xlu0 %91
  %93 = vrot.lane.b32.xlu0 %v43, 16
  %v94 = vpop.permute.xlu0 %93
  %95 = vrot.lane.b32.xlu0 %v46, 16
  %v96 = vpop.permute.xlu0 %95
  %97 = vrot.lane.b32.xlu0 %v49, 16
  %v98 = vpop.permute.xlu0 %97
  %99 = vrot.lane.b32.xlu0 %v52, 16
  %v100 = vpop.permute.xlu0 %99
  %vm109 = vcmask 130048
  %v110 = vsel %vm109, %v62, %v86
  %v111 = vsel %vm109, %v64, %v88
  %v112 = vsel %vm109, %v66, %v90
  %v113 = vsel %vm109, %v68, %v92
  %v114 = vsel %vm109, %v70, %v94
  %v115 = vsel %vm109, %v72, %v96
  %v116 = vsel %vm109, %v74, %v98
  %v117 = vsel %vm109, %v76, %v100
  %v118 = vld [vmem:[%s0] sm:$0xff]
  %v119 = vld [vmem:[%s0 + $0x8] sm:$0xff]
  %v120 = vld [vmem:[%s0 + $0x10] sm:$0xff]
  %v121 = vld [vmem:[%s0 + $0x18] sm:$0xff]
  %v122 = vld [vmem:[%s0 + $0x20] sm:$0xff]
  %v123 = vld [vmem:[%s0 + $0x28] sm:$0xff]
  %v124 = vld [vmem:[%s0 + $0x30] sm:$0xff]
  %v125 = vld [vmem:[%s0 + $0x38] sm:$0xff]
  %v126 = vmul.f32 %v31, %v118
  %v127 = vmul.f32 %v34, %v119
  %v128 = vmul.f32 %v37, %v120
  %v129 = vmul.f32 %v40, %v121
  %v130 = vmul.f32 %v43, %v122
  %v131 = vmul.f32 %v46, %v123
  %v132 = vmul.f32 %v49, %v124
  %v133 = vmul.f32 %v52, %v125
  %v134 = vld [vmem:[%s1] sm:$0xff]
  %v135 = vld [vmem:[%s1 + $0x8] sm:$0xff]
  %v136 = vld [vmem:[%s1 + $0x10] sm:$0xff]
  %v137 = vld [vmem:[%s1 + $0x18] sm:$0xff]
  %v138 = vld [vmem:[%s1 + $0x20] sm:$0xff]
  %v139 = vld [vmem:[%s1 + $0x28] sm:$0xff]
  %v140 = vld [vmem:[%s1 + $0x30] sm:$0xff]
  %v141 = vld [vmem:[%s1 + $0x38] sm:$0xff]
  %v142 = vmul.f32 %v110, %v134
  %v143 = vmul.f32 %v111, %v135
  %v144 = vmul.f32 %v112, %v136
  %v145 = vmul.f32 %v113, %v137
  %v146 = vmul.f32 %v114, %v138
  %v147 = vmul.f32 %v115, %v139
  %v148 = vmul.f32 %v116, %v140
  %v149 = vmul.f32 %v117, %v141
  %v150 = vadd.f32 %v126, %v142
  %v151 = vadd.f32 %v127, %v143
  %v152 = vadd.f32 %v128, %v144
  %v153 = vadd.f32 %v129, %v145
  %v154 = vadd.f32 %v130, %v146
  %v155 = vadd.f32 %v131, %v147
  %v156 = vadd.f32 %v132, %v148
  %v157 = vadd.f32 %v133, %v149
  %vm158 = vcmask 261120
  %159 = vst.msk [vmem:[%s3] sm:$0xff] %vm158, %v150
  %160 = vst.msk [vmem:[%s3 + $0x8] sm:$0xff] %vm158, %v151
  %161 = vst.msk [vmem:[%s3 + $0x10] sm:$0xff] %vm158, %v152
  %162 = vst.msk [vmem:[%s3 + $0x18] sm:$0xff] %vm158, %v153
  %163 = vst.msk [vmem:[%s3 + $0x20] sm:$0xff] %vm158, %v154
  %164 = vst.msk [vmem:[%s3 + $0x28] sm:$0xff] %vm158, %v155
  %165 = vst.msk [vmem:[%s3 + $0x30] sm:$0xff] %vm158, %v156
  %166 = vst.msk [vmem:[%s3 + $0x38] sm:$0xff] %vm158, %v157
  // Predicated region
  $region14: #{tpu_custom_call.1} parent=0 // pred_check
    _
  $region15: #{tpu_custom_call.1} parent=0 // pred_check_branch
    %168 = sbr.rel (0) target = $region17
  $region16: #{tpu_custom_call.1} parent=0 // pred_region
    _
  $region17: #{tpu_custom_call.1} parent=0 // pred_fallthru
    _
  // Predicated region
  $region18: #{tpu_custom_call.1} parent=0 // pred_check
    _
  $region19: #{tpu_custom_call.1} parent=0 // pred_check_branch
    %170 = sbr.rel (0) target = $region21
  $region20: #{tpu_custom_call.1} parent=0 // pred_region
    _
  $region21: #{tpu_custom_call.1} parent=0 // pred_fallthru
    _

// kernel: tpu_custom_call.1
$region0: #{tpu_custom_call.1}
  #allocation0 [shape = 'u32[]', space=smem, size = 0x4, offset = 0x4, fixed_abs, tag = 'smem constant byte address 0x4 - core index']
  #allocation1 [shape = 'u32[72,128]{1,0:T(1,128)}', space=vmem, size = 0x9000, scoped, tag = 'internal scratch']
  %s0 = inlined_call_operand.vmem [shape: f32[64,32], index: 0, kind: input, shape index: {}]
  %s1 = inlined_call_operand.vmem [shape: f32[64,32], index: 1, kind: input, shape index: {}]
  %s2 = inlined_call_operand.vmem [shape: f32[64,32], index: 2, kind: input, shape index: {}]
  %s3 = inlined_call_operand.vmem [shape: f32[64,32], index: 3, kind: output, shape index: {}]
  %s4 = sld [smem:[#allocation0]]
  $region22: #{tpu_custom_call.1} parent=0
    _
  %s6 = ssub.s32 1, %s4
  %s7 = scalar_select 0, %s6, %s4
  // Predicated region
  $region2: #{tpu_custom_call.1} parent=0 // pred_check
    _
  $region3: #{tpu_custom_call.1} parent=0 // pred_check_branch
    %9 = sbr.rel (0) target = $region5
  $region4: #{tpu_custom_call.1} parent=0 // pred_region
    _
  $region5: #{tpu_custom_call.1} parent=0 // pred_fallthru
    _
  // Predicated region
  $region6: #{tpu_custom_call.1} parent=0 // pred_check
    _
  $region7: #{tpu_custom_call.1} parent=0 // pred_check_branch
    %11 = sbr.rel (0) target = $region9
  $region8: #{tpu_custom_call.1} parent=0 // pred_region
    _
  $region9: #{tpu_custom_call.1} parent=0 // pred_fallthru
    _
  // Predicated region
  $region10: #{tpu_custom_call.1} parent=0 // pred_check
    _
  $region11: #{tpu_custom_call.1} parent=0 // pred_check_branch
    %13 = sbr.rel (0) target = $region13
  $region12: #{tpu_custom_call.1} parent=0 // pred_region
    _
  $region13: #{tpu_custom_call.1} parent=0 // pred_fallthru
    _
  %v14 = vld [vmem:[%s2] sm:$0xff]
  %v15 = vld [vmem:[%s2 + $0x8] sm:$0xff]
  %v16 = vld [vmem:[%s2 + $0x10] sm:$0xff]
  %v17 = vld [vmem:[%s2 + $0x18] sm:$0xff]
  %v18 = vld [vmem:[%s2 + $0x20] sm:$0xff]
  %v19 = vld [vmem:[%s2 + $0x28] sm:$0xff]
  %v20 = vld [vmem:[%s2 + $0x30] sm:$0xff]
  %v21 = vld [vmem:[%s2 + $0x38] sm:$0xff]
  %30 = vrot.lane.b32.xlu0 %v14, 112
  %v31 = vpop.permute.xlu0 %30
  %32 = vrot.lane.b32.xlu0 %v15, 112
  %v33 = vpop.permute.xlu0 %32
  %34 = vrot.lane.b32.xlu0 %v16, 112
  %v35 = vpop.permute.xlu0 %34
  %36 = vrot.lane.b32.xlu0 %v17, 112
  %v37 = vpop.permute.xlu0 %36
  %38 = vrot.lane.b32.xlu0 %v18, 112
  %v39 = vpop.permute.xlu0 %38
  %40 = vrot.lane.b32.xlu0 %v19, 112
  %v41 = vpop.permute.xlu0 %40
  %42 = vrot.lane.b32.xlu0 %v20, 112
  %v43 = vpop.permute.xlu0 %42
  %44 = vrot.lane.b32.xlu0 %v21, 112
  %v45 = vpop.permute.xlu0 %44
  %54 = vrot.lane.b32.xlu0 %v14, 16
  %v55 = vpop.permute.xlu0 %54
  %56 = vrot.lane.b32.xlu0 %v15, 16
  %v57 = vpop.permute.xlu0 %56
  %58 = vrot.lane.b32.xlu0 %v16, 16
  %v59 = vpop.permute.xlu0 %58
  %60 = vrot.lane.b32.xlu0 %v17, 16
  %v61 = vpop.permute.xlu0 %60
  %62 = vrot.lane.b32.xlu0 %v18, 16
  %v63 = vpop.permute.xlu0 %62
  %64 = vrot.lane.b32.xlu0 %v19, 16
  %v65 = vpop.permute.xlu0 %64
  %66 = vrot.lane.b32.xlu0 %v20, 16
  %v67 = vpop.permute.xlu0 %66
  %68 = vrot.lane.b32.xlu0 %v21, 16
  %v69 = vpop.permute.xlu0 %68
  %vm78 = vcmask 130048
  %v79 = vsel %vm78, %v31, %v55
  %v80 = vsel %vm78, %v33, %v57
  %v81 = vsel %vm78, %v35, %v59
  %v82 = vsel %vm78, %v37, %v61
  %v83 = vsel %vm78, %v39, %v63
  %v84 = vsel %vm78, %v41, %v65
  %v85 = vsel %vm78, %v43, %v67
  %v86 = vsel %vm78, %v45, %v69
  %v87 = vld [vmem:[%s0] sm:$0xff]
  %v88 = vld [vmem:[%s0 + $0x8] sm:$0xff]
  %v89 = vld [vmem:[%s0 + $0x10] sm:$0xff]
  %v90 = vld [vmem:[%s0 + $0x18] sm:$0xff]
  %v91 = vld [vmem:[%s0 + $0x20] sm:$0xff]
  %v92 = vld [vmem:[%s0 + $0x28] sm:$0xff]
  %v93 = vld [vmem:[%s0 + $0x30] sm:$0xff]
  %v94 = vld [vmem:[%s0 + $0x38] sm:$0xff]
  %v95 = vmul.f32 %v14, %v87
  %v96 = vmul.f32 %v15, %v88
  %v97 = vmul.f32 %v16, %v89
  %v98 = vmul.f32 %v17, %v90
  %v99 = vmul.f32 %v18, %v91
  %v100 = vmul.f32 %v19, %v92
  %v101 = vmul.f32 %v20, %v93
  %v102 = vmul.f32 %v21, %v94
  %v103 = vld [vmem:[%s1] sm:$0xff]
  %v104 = vld [vmem:[%s1 + $0x8] sm:$0xff]
  %v105 = vld [vmem:[%s1 + $0x10] sm:$0xff]
  %v106 = vld [vmem:[%s1 + $0x18] sm:$0xff]
  %v107 = vld [vmem:[%s1 + $0x20] sm:$0xff]
  %v108 = vld [vmem:[%s1 + $0x28] sm:$0xff]
  %v109 = vld [vmem:[%s1 + $0x30] sm:$0xff]
  %v110 = vld [vmem:[%s1 + $0x38] sm:$0xff]
  %v111 = vmul.f32 %v79, %v103
  %v112 = vmul.f32 %v80, %v104
  %v113 = vmul.f32 %v81, %v105
  %v114 = vmul.f32 %v82, %v106
  %v115 = vmul.f32 %v83, %v107
  %v116 = vmul.f32 %v84, %v108
  %v117 = vmul.f32 %v85, %v109
  %v118 = vmul.f32 %v86, %v110
  %v119 = vadd.f32 %v95, %v111
  %v120 = vadd.f32 %v96, %v112
  %v121 = vadd.f32 %v97, %v113
  %v122 = vadd.f32 %v98, %v114
  %v123 = vadd.f32 %v99, %v115
  %v124 = vadd.f32 %v100, %v116
  %v125 = vadd.f32 %v101, %v117
  %v126 = vadd.f32 %v102, %v118
  %vm127 = vcmask 261120
  %128 = vst.msk [vmem:[%s3] sm:$0xff] %vm127, %v119
  %129 = vst.msk [vmem:[%s3 + $0x8] sm:$0xff] %vm127, %v120
  %130 = vst.msk [vmem:[%s3 + $0x10] sm:$0xff] %vm127, %v121
  %131 = vst.msk [vmem:[%s3 + $0x18] sm:$0xff] %vm127, %v122
  %132 = vst.msk [vmem:[%s3 + $0x20] sm:$0xff] %vm127, %v123
  %133 = vst.msk [vmem:[%s3 + $0x28] sm:$0xff] %vm127, %v124
  %134 = vst.msk [vmem:[%s3 + $0x30] sm:$0xff] %vm127, %v125
  %135 = vst.msk [vmem:[%s3 + $0x38] sm:$0xff] %vm127, %v126
  // Predicated region
  $region14: #{tpu_custom_call.1} parent=0 // pred_check
    _
  $region15: #{tpu_custom_call.1} parent=0 // pred_check_branch
    %137 = sbr.rel (0) target = $region17
  $region16: #{tpu_custom_call.1} parent=0 // pred_region
    _
  $region17: #{tpu_custom_call.1} parent=0 // pred_fallthru
    _
  // Predicated region
  $region18: #{tpu_custom_call.1} parent=0 // pred_check
    _
  $region19: #{tpu_custom_call.1} parent=0 // pred_check_branch
    %139 = sbr.rel (0) target = $region21
  $region20: #{tpu_custom_call.1} parent=0 // pred_region
    _
  $region21: #{tpu_custom_call.1} parent=0 // pred_fallthru
    _

</llo_original>
